<compile_context>
chip_gen: v6e
topology: v6e:2x2x1
jax: 0.10.0
libtpu: 0.0.40
codegen_flags: <defaults>
</compile_context>

<pallas_src>
import functools

import jax
import jax.numpy as jnp
from jax import lax
from jax.experimental import pallas as pl
from jax.experimental.pallas import tpu as pltpu


def _round_up(a: int, b: int) -> int:
    return ((a + b - 1) // b) * b


def _cluster_kernel(x_ref, c_ref, csq_ref, o_ref, *, alpha: float, k_valid: int):
    """One N-tile: pairwise sq-distances via MXU + elementwise + row reduce."""
    x = x_ref[...]                                   # (TN, D_pad), native dtype
    c = c_ref[...]                                   # (K_pad, D_pad), native dtype

    # ||x||^2 in f32 (avoid cancellation in the expansion below).
    x_f32 = x.astype(jnp.float32)
    x_sq = jnp.sum(x_f32 * x_f32, axis=-1, keepdims=True)          # (TN, 1)

    # Cross term on the MXU; rhs contracted on its feature dim (no transpose op).
    cross = lax.dot_general(
        x, c, (((1,), (1,)), ((), ())), preferred_element_type=jnp.float32
    )                                                               # (TN, K_pad)

    # ||x - c||^2 = ||x||^2 - 2 x.c + ||c||^2   (c_sq precomputed in wrapper)
    sq_dist = x_sq - 2.0 * cross + csq_ref[...]                     # (TN, K_pad)
    sq_dist = jnp.maximum(sq_dist, 0.0)                             # fp round-off guard

    exponent = -(alpha + 1.0) / 2.0
    base = 1.0 + sq_dist / alpha
    if exponent == -1.0:
        # DEC default alpha == 1 -> plain reciprocal (single EUP op, exact).
        nom = pl.reciprocal(base, approx=False)
    elif exponent == -0.5:
        nom = lax.rsqrt(base)
    else:
        nom = jnp.power(base, exponent)

    # Zero out padded cluster columns so they don't inflate the denominator.
    if k_valid != nom.shape[-1]:
        col = lax.broadcasted_iota(jnp.int32, nom.shape, 1)
        nom = jnp.where(col < k_valid, nom, 0.0)

    denom = jnp.sum(nom, axis=-1, keepdims=True)                    # (TN, 1)
    o_ref[...] = (nom * pl.reciprocal(denom, approx=False)).astype(o_ref.dtype)


def cluster(x, center, alpha, *, tn: int = 512):
    """Pallas wrapper. x: (N, D), center: (K, D) -> (N, K)."""
    n, d = x.shape
    k, d2 = center.shape
    assert d == d2, "feature dims of x and center must match"

    # Lane-align feature and cluster axes; zero-padding is numerically free for
    # D (adds 0 to every distance); padded K columns are masked in-kernel.
    d_pad = _round_up(max(d, 128), 128)
    k_pad = _round_up(max(k, 128), 128)

    # N tiling: big tiles for pipelining, but never bigger than (padded) N.
    n_tile = min(tn, _round_up(n, 8))
    n_pad = _round_up(n, n_tile)

    x_p = jnp.zeros((n_pad, d_pad), dtype=x.dtype).at[:n, :d].set(x)
    c_p = jnp.zeros((k_pad, d_pad), dtype=center.dtype).at[:k, :d].set(center)

    # ||c||^2 hoisted out of the kernel (constant across all N tiles).
    c_f32 = c_p.astype(jnp.float32)
    c_sq = jnp.sum(c_f32 * c_f32, axis=-1, keepdims=True).T          # (1, K_pad)

    grid = (n_pad // n_tile,)

    # VMEM budget: double-buffered x + out tiles, resident center + c_sq, headroom.
    x_bytes = n_tile * d_pad * x.dtype.itemsize
    out_bytes = n_tile * k_pad * x.dtype.itemsize
    c_bytes = k_pad * d_pad * center.dtype.itemsize + k_pad * 4
    vmem_limit = min(
        128 * 1024 * 1024, 2 * x_bytes + 2 * out_bytes + c_bytes + (8 << 20)
    )

    kernel = functools.partial(_cluster_kernel, alpha=float(alpha), k_valid=k)
    out_p = pl.pallas_call(
        kernel,
        out_shape=jax.ShapeDtypeStruct((n_pad, k_pad), x.dtype),
        grid=grid,
        in_specs=[
            pl.BlockSpec((n_tile, d_pad), lambda i: (i, 0)),   # x tile (pipelined)
            pl.BlockSpec((k_pad, d_pad), lambda i: (0, 0)),    # centers (resident)
            pl.BlockSpec((1, k_pad), lambda i: (0, 0)),        # ||c||^2 (resident)
        ],
        out_specs=pl.BlockSpec((n_tile, k_pad), lambda i: (i, 0)),
        compiler_params=pltpu.CompilerParams(
            dimension_semantics=("parallel",),
            vmem_limit_bytes=int(vmem_limit),
        ),
    )(x_p, c_p, c_sq)

    return out_p[:n, :k]


def cluster_ref(x, center, alpha):
    """Pure-JAX reference mirroring the PyTorch broadcast formulation."""
    diff = x[:, None, :] - center[None, :, :]
    sq = jnp.sum(diff * diff, axis=2)
    nom = jnp.power(1.0 + sq / alpha, -(alpha + 1.0) / 2.0)
    denom = jnp.sum(nom, axis=1, keepdims=True)
    return nom / denom


if __name__ == "__main__":
    # Small shapes consistent with the module: N samples, D-dim embeddings, K clusters.
    N, D, K = 8, 32, 4
    alpha = 1.0

    key = jax.random.PRNGKey(0)
    kx, kc = jax.random.split(key)
    x = jax.random.normal(kx, (N, D), dtype=jnp.float32)
    # Deterministic synthetic cluster centers (stand-in for the module's `center` param).
    center = jax.random.normal(kc, (K, D), dtype=jnp.float32)

    out = cluster(x, center, alpha)
    jax.block_until_ready(out)

    ref = cluster_ref(x, center, alpha)
    assert out.shape == (N, K)
    assert jnp.allclose(out, ref, rtol=1e-5, atol=1e-5), "mismatch vs reference"
    # Rows are probability distributions over clusters.
    assert jnp.allclose(jnp.sum(out, axis=1), 1.0, rtol=1e-5, atol=1e-5)

    print("KERNEL_OK")
</pallas_src>

<mosaic_0001>
module attributes {stable_mosaic.version = 11 : i64} {
  func.func @_cluster_kernel(%arg0: i32, %arg1: memref<8x128xf32, #tpu.memory_space<vmem>>, %arg2: memref<128x128xf32, #tpu.memory_space<vmem>>, %arg3: memref<1x128xf32, #tpu.memory_space<vmem>>, %arg4: memref<8x128xf32, #tpu.memory_space<vmem>>) attributes {dimension_semantics = [#tpu.dimension_semantics<parallel>], iteration_bounds = array<i64: 1>, scalar_prefetch = 0 : i64, scratch_operands = 0 : i64, tpu.core_type = #tpu.core_type<tc>, window_params = [{transform_indices = @transform_0, window_bounds = array<i64: 8, 128>}, {pipeline_mode = #tpu.pipeline_mode<synchronous>, transform_indices = @transform_1, window_bounds = array<i64: 128, 128>}, {pipeline_mode = #tpu.pipeline_mode<synchronous>, transform_indices = @transform_2, window_bounds = array<i64: 1, 128>}, {transform_indices = @transform_3, window_bounds = array<i64: 8, 128>}]} {
    %c0 = arith.constant 0 : index
    %c0_0 = arith.constant 0 : index
    %0 = vector.load %arg1[%c0, %c0_0] : memref<8x128xf32, #tpu.memory_space<vmem>>, vector<8x128xf32>
    %c0_1 = arith.constant 0 : index
    %c0_2 = arith.constant 0 : index
    %1 = vector.load %arg2[%c0_1, %c0_2] : memref<128x128xf32, #tpu.memory_space<vmem>>, vector<128x128xf32>
    %2 = arith.mulf %0, %0 : vector<8x128xf32>
    %cst = arith.constant dense<0.000000e+00> : vector<8xf32>
    %3 = vector.multi_reduction <add>, %2, %cst [1] : vector<8x128xf32> to vector<8xf32>
    %4 = vector.shape_cast %3 : vector<8xf32> to vector<8x1xf32>
    %cst_3 = arith.constant dense<0.000000e+00> : vector<8x128xf32>
    %5 = tpu.matmul %0, %1, %cst_3 {dimension_numbers = #tpu.dot_dimension_numbers<[1], [1], [0], [0], [0, 0, 1, 0], [], []>} : vector<8x128xf32>, vector<128x128xf32>, vector<8x128xf32> -> vector<8x128xf32>
    %cst_4 = arith.constant 2.000000e+00 : f32
    %6 = vector.broadcast %cst_4 : f32 to vector<8x128xf32>
    %7 = arith.mulf %6, %5 : vector<8x128xf32>
    %8 = vector.broadcast %4 : vector<8x1xf32> to vector<8x128xf32>
    %9 = arith.subf %8, %7 : vector<8x128xf32>
    %c0_5 = arith.constant 0 : index
    %c0_6 = arith.constant 0 : index
    %10 = vector.load %arg3[%c0_5, %c0_6] : memref<1x128xf32, #tpu.memory_space<vmem>>, vector<1x128xf32>
    %11 = vector.broadcast %10 : vector<1x128xf32> to vector<8x128xf32>
    %12 = arith.addf %9, %11 : vector<8x128xf32>
    %cst_7 = arith.constant 0.000000e+00 : f32
    %13 = vector.broadcast %cst_7 : f32 to vector<8x128xf32>
    %14 = arith.maximumf %12, %13 : vector<8x128xf32>
    %cst_8 = arith.constant 1.000000e+00 : f32
    %15 = vector.broadcast %cst_8 : f32 to vector<8x128xf32>
    %16 = arith.divf %14, %15 : vector<8x128xf32>
    %cst_9 = arith.constant 1.000000e+00 : f32
    %17 = vector.broadcast %cst_9 : f32 to vector<8x128xf32>
    %18 = arith.addf %17, %16 : vector<8x128xf32>
    %19 = tpu.reciprocal %18 : vector<8x128xf32> -> vector<8x128xf32>
    %20 = tpu.iota {dimensions = array<i32: 1>} : vector<8x128xi32>
    %c4_i32 = arith.constant 4 : i32
    %21 = vector.broadcast %c4_i32 : i32 to vector<8x128xi32>
    %22 = arith.cmpi slt, %20, %21 : vector<8x128xi32>
    %cst_10 = arith.constant 0.000000e+00 : f32
    %23 = vector.broadcast %cst_10 : f32 to vector<8x128xf32>
    %24 = arith.select %22, %19, %23 : vector<8x128xi1>, vector<8x128xf32>
    %cst_11 = arith.constant dense<0.000000e+00> : vector<8xf32>
    %25 = vector.multi_reduction <add>, %24, %cst_11 [1] : vector<8x128xf32> to vector<8xf32>
    %26 = vector.shape_cast %25 : vector<8xf32> to vector<8x1xf32>
    %27 = tpu.reciprocal %26 : vector<8x1xf32> -> vector<8x1xf32>
    %28 = vector.broadcast %27 : vector<8x1xf32> to vector<8x128xf32>
    %29 = arith.mulf %24, %28 : vector<8x128xf32>
    %c0_12 = arith.constant 0 : index
    %c0_13 = arith.constant 0 : index
    %30 = vector.load %arg4[%c0_12, %c0_13] : memref<8x128xf32, #tpu.memory_space<vmem>>, vector<8x128xf32>
    tpu.vector_store %arg4[%c0_12, %c0_13], %29 {strides = array<i32>} : memref<8x128xf32, #tpu.memory_space<vmem>>, vector<8x128xf32>,
    return
  }
  func.func @transform_0(%arg0: i32) -> (i32, i32) {
    %c0_i32 = arith.constant 0 : i32
    %c0_i32_0 = arith.constant 0 : i32
    return %arg0, %c0_i32 : i32, i32
  }
  func.func @transform_1(%arg0: i32) -> (i32, i32) {
    %c0_i32 = arith.constant 0 : i32
    %c0_i32_0 = arith.constant 0 : i32
    %c0_i32_1 = arith.constant 0 : i32
    return %c0_i32, %c0_i32_0 : i32, i32
  }
  func.func @transform_2(%arg0: i32) -> (i32, i32) {
    %c0_i32 = arith.constant 0 : i32
    %c0_i32_0 = arith.constant 0 : i32
    %c0_i32_1 = arith.constant 0 : i32
    return %c0_i32, %c0_i32_0 : i32, i32
  }
  func.func @transform_3(%arg0: i32) -> (i32, i32) {
    %c0_i32 = arith.constant 0 : i32
    %c0_i32_0 = arith.constant 0 : i32
    return %arg0, %c0_i32 : i32, i32
  }
}

</mosaic_0001>

<llo_original>
// kernel: tpu_custom_call.1
$region0: #{tpu_custom_call.1}
  #allocation0 [shape = 'u32[]', space=smem, size = 0x4, offset = 0x4, fixed_abs, tag = 'smem constant byte address 0x4 - core index']
  #allocation1 [shape = 'u32[144,128]{1,0:T(1,128)}', space=vmem, size = 0x12000, scoped, tag = 'internal scratch']
  %s0 = inlined_call_operand.hbm [shape: f32[8,128], index: 0, kind: input, shape index: {}]
  %s1 = inlined_call_operand.hbm [shape: f32[128,128], index: 1, kind: input, shape index: {}]
  %s2 = inlined_call_operand.vmem [shape: f32[1,128], index: 2, kind: input, shape index: {}]
  %s3 = inlined_call_operand.hbm [shape: f32[8,128], index: 3, kind: output, shape index: {}]
  %s4 = sld [smem:[#allocation0]]
  $region30: #{tpu_custom_call.1} parent=0
    _
  %s6 = ssub.s32 1, %s4
  %s7 = scalar_select 0, %s6, %s4
  $region1: #{tpu_custom_call.1} parent=0
    #allocation2 [shape = 'u8[4096]{0}', space=vmem, size = 0x1000, scoped, tag = 'input window, operand 0, single buffered']
    #allocation3 [shape = 's32[1]{0}', space=sflag, size = 0x4, scoped, tag = 'scoped memory for tpu_custom_call.1']
    #allocation4 [shape = 's32[1]{0}', space=sflag, size = 0x4, scoped, tag = 'scoped memory for tpu_custom_call.1']
    #allocation5 [shape = 'u8[65536]{0}', space=vmem, size = 0x10000, scoped, tag = 'input window, operand 1, single buffered']
    #allocation6 [shape = 's32[1]{0}', space=sflag, size = 0x4, scoped, tag = 'scoped memory for tpu_custom_call.1']
    #allocation7 [shape = 'u8[4096]{0}', space=vmem, size = 0x1000, scoped, tag = 'output window, operand 0, single buffered']
    %8 = vsyncpa [#allocation3], 0
    %9 = vsyncpa [#allocation6], 0
    %10 = vsyncpa [#allocation4], 0
    // Predicated region
    $region2: #{tpu_custom_call.1} parent=1 // pred_check
      _
    $region3: #{tpu_custom_call.1} parent=1 // pred_check_branch
      %12 = sbr.rel (0) target = $region5
    $region4: #{tpu_custom_call.1} parent=1 // pred_region
      %s14 = ssub.s32 128, 128
      %15 = vsyncadd [#allocation3], %s14
      %s17 = sshll.u32 [#allocation2], 4
      %s18 = int_to_ptr.vmem [resolvable:$true] %s17
      %20 = dma.hbm_to_vmem [thread:$0]  %s0, 128, %s18, [#allocation3]
    $region5: #{tpu_custom_call.1} parent=1 // pred_fallthru
      _
    // Predicated region
    $region6: #{tpu_custom_call.1} parent=1 // pred_check
      _
    $region7: #{tpu_custom_call.1} parent=1 // pred_check_branch
      %22 = sbr.rel (0) target = $region9
    $region8: #{tpu_custom_call.1} parent=1 // pred_region
      %s24 = ssub.s32 2048, 2048
      %25 = vsyncadd [#allocation6], %s24
      %s26 = sshll.u32 [#allocation5], 4
      %s27 = int_to_ptr.vmem [resolvable:$true] %s26
      %32 = dma.hbm_to_vmem [thread:$0]  %s1, 2048, %s27, [#allocation6], 128, 128, 8
    $region9: #{tpu_custom_call.1} parent=1 // pred_fallthru
      _
    // Predicated region
    $region10: #{tpu_custom_call.1} parent=1 // pred_check
      _
    $region11: #{tpu_custom_call.1} parent=1 // pred_check_branch
      %34 = sbr.rel (0) target = $region13
    $region12: #{tpu_custom_call.1} parent=1 // pred_region
      _
    $region13: #{tpu_custom_call.1} parent=1 // pred_fallthru
      _
    // Predicated region
    $region14: #{tpu_custom_call.1} parent=1 // pred_check
      _
    $region15: #{tpu_custom_call.1} parent=1 // pred_check_branch
      %36 = sbr.rel (0) target = $region17
    $region16: #{tpu_custom_call.1} parent=1 // pred_region
      %37 = dma.done [#allocation3], 128
    $region17: #{tpu_custom_call.1} parent=1 // pred_fallthru
      _
    // Predicated region
    $region18: #{tpu_custom_call.1} parent=1 // pred_check
      _
    $region19: #{tpu_custom_call.1} parent=1 // pred_check_branch
      %39 = sbr.rel (0) target = $region21
    $region20: #{tpu_custom_call.1} parent=1 // pred_region
      %40 = dma.done [#allocation6], 2048
    $region21: #{tpu_custom_call.1} parent=1 // pred_fallthru
      _
    %v41 = vld [vmem:[#allocation2] sm:$0xff]
    %v42 = vld [vmem:[#allocation5] sm:$0xff]
    %v43 = vld [vmem:[#allocation5 + $0x8] sm:$0xff]
    %v44 = vld [vmem:[#allocation5 + $0x10] sm:$0xff]
    %v45 = vld [vmem:[#allocation5 + $0x18] sm:$0xff]
    %v46 = vld [vmem:[#allocation5 + $0x20] sm:$0xff]
    %v47 = vld [vmem:[#allocation5 + $0x28] sm:$0xff]
    %v48 = vld [vmem:[#allocation5 + $0x30] sm:$0xff]
    %v49 = vld [vmem:[#allocation5 + $0x38] sm:$0xff]
    %v50 = vld [vmem:[#allocation5 + $0x40] sm:$0xff]
    %v51 = vld [vmem:[#allocation5 + $0x48] sm:$0xff]
    %v52 = vld [vmem:[#allocation5 + $0x50] sm:$0xff]
    %v53 = vld [vmem:[#allocation5 + $0x58] sm:$0xff]
    %v54 = vld [vmem:[#allocation5 + $0x60] sm:$0xff]
    %v55 = vld [vmem:[#allocation5 + $0x68] sm:$0xff]
    %v56 = vld [vmem:[#allocation5 + $0x70] sm:$0xff]
    %v57 = vld [vmem:[#allocation5 + $0x78] sm:$0xff]
    %v58 = vmul.f32 %v41, %v41
    %59 = vadd.xlane.f32.xlu0 %v58
    %v60 = vpop.xlane.xlu0 %59
    %61 = vmatprep.subr.mxu0 0.0
    %62 = vmatpush1.xpose.msra.mxu0 %v57
    %63 = vmatprep.subr.mxu0 0.0
    %64 = vmatpush1.xpose.msra.mxu0 %v56
    %65 = vmatprep.subr.mxu0 0.0
    %66 = vmatpush1.xpose.msra.mxu0 %v55
    %67 = vmatprep.subr.mxu0 0.0
    %68 = vmatpush1.xpose.msra.mxu0 %v54
    %69 = vmatprep.subr.mxu0 0.0
    %70 = vmatpush1.xpose.msra.mxu0 %v53
    %71 = vmatprep.subr.mxu0 0.0
    %72 = vmatpush1.xpose.msra.mxu0 %v52
    %73 = vmatprep.subr.mxu0 0.0
    %74 = vmatpush1.xpose.msra.mxu0 %v51
    %75 = vmatprep.subr.mxu0 0.0
    %76 = vmatpush1.xpose.msra.mxu0 %v50
    %77 = vmatprep.subr.mxu0 0.0
    %78 = vmatpush1.xpose.msra.mxu0 %v49
    %79 = vmatprep.subr.mxu0 0.0
    %80 = vmatpush1.xpose.msra.mxu0 %v48
    %81 = vmatprep.subr.mxu0 0.0
    %82 = vmatpush1.xpose.msra.mxu0 %v47
    %83 = vmatprep.subr.mxu0 0.0
    %84 = vmatpush1.xpose.msra.mxu0 %v46
    %85 = vmatprep.subr.mxu0 0.0
    %86 = vmatpush1.xpose.msra.mxu0 %v45
    %87 = vmatprep.subr.mxu0 0.0
    %88 = vmatpush1.xpose.msra.mxu0 %v44
    %89 = vmatprep.subr.mxu0 0.0
    %90 = vmatpush1.xpose.msra.mxu0 %v43
    %91 = vmatprep.subr.mxu0 0.0
    %92 = vmatpush1.xpose.msra.mxu0 %v42
    %93 = vmatprep.subr.mxu0 0.0
    %94 = vmatpush2.xpose.msra.mxu0 0.0
    %95 = vmatprep.subr.mxu0 0.0
    %96 = vmatpush2.xpose.msra.mxu0 0.0
    %97 = vmatprep.subr.mxu0 0.0
    %98 = vmatpush2.xpose.msra.mxu0 0.0
    %99 = vmatprep.subr.mxu0 0.0
    %100 = vmatpush2.xpose.msra.mxu0 0.0
    %101 = vmatprep.subr.mxu0 0.0
    %102 = vmatpush2.xpose.msra.mxu0 0.0
    %103 = vmatprep.subr.mxu0 0.0
    %104 = vmatpush2.xpose.msra.mxu0 0.0
    %105 = vmatprep.subr.mxu0 0.0
    %106 = vmatpush2.xpose.msra.mxu0 0.0
    %107 = vmatprep.subr.mxu0 0.0
    %108 = vmatpush2.xpose.msra.mxu0 0.0
    %109 = vmatprep.subr.mxu0 0.0
    %110 = vmatpush2.xpose.msra.mxu0 0.0
    %111 = vmatprep.subr.mxu0 0.0
    %112 = vmatpush2.xpose.msra.mxu0 0.0
    %113 = vmatprep.subr.mxu0 0.0
    %114 = vmatpush2.xpose.msra.mxu0 0.0
    %115 = vmatprep.subr.mxu0 0.0
    %116 = vmatpush2.xpose.msra.mxu0 0.0
    %117 = vmatprep.subr.mxu0 0.0
    %118 = vmatpush2.xpose.msra.mxu0 0.0
    %119 = vmatprep.subr.mxu0 0.0
    %120 = vmatpush2.xpose.msra.mxu0 0.0
    %121 = vmatprep.subr.mxu0 0.0
    %122 = vmatpush2.xpose.msra.mxu0 0.0
    %123 = vmatprep.subr.mxu0 0.0
    %124 = vmatpush2.xpose.msra.mxu0 0.0
    %125 = vmatprep.mubr.f32.mxu0 0.0
    %126 = vmatmul.mubr.f32.gmra.mxu0 %v41
    %v127 = vpop.f32.mrf.mxu0
    %v128 = vadd.f32 0.0, %v127
    %v129 = vpop.f32.mrf.mxu0
    %130 = vdwg.mxu0
    %v131 = vmul.f32 %v128, 2.0
    %v132 = vsub.f32 %v60, %v131
    %v133 = vld [vmem:[%s2] sm:$0x1]
    %v135 = vlaneseq
    %v136 = vshrl.u32 %v135, 7
    %v137 = vsub.s32 0, %v136
    %v138 = vrot.slane %v133, %v137
    %v140 = vadd.f32 %v132, %v138
    %v141 = vmax.f32 %v140, 0.0
    %v142 = vadd.f32 %v141, 1.0
    %v143 = vrcp.pop %v142
    %v144 = vlaneseq
    %v145 = vand.u32 %v144, 127
    %vm146 = vcmp.lt.s32.totalorder %v145, 4
    %v147 = vsel %vm146, %v143, 0.0
    %148 = vadd.xlane.f32.xlu0 %v147
    %v149 = vpop.xlane.xlu0 %148
    %v150 = vrcp.pop %v149
    %v151 = vmul.f32 %v147, %v150
    %152 = vst [vmem:[#allocation7] sm:$0xff] %v151
    // Predicated region
    $region22: #{tpu_custom_call.1} parent=1 // pred_check
      _
    $region23: #{tpu_custom_call.1} parent=1 // pred_check_branch
      %154 = sbr.rel (0) target = $region25
    $region24: #{tpu_custom_call.1} parent=1 // pred_region
      %s156 = ssub.s32 128, 128
      %157 = vsyncadd [#allocation4], %s156
      %s159 = sshll.u32 [#allocation7], 4
      %s160 = int_to_ptr.vmem [resolvable:$true] %s159
      %162 = dma.vmem_to_hbm [thread:$0]  %s160, 128, %s3, [#allocation4]
    $region25: #{tpu_custom_call.1} parent=1 // pred_fallthru
      _
    // Predicated region
    $region26: #{tpu_custom_call.1} parent=1 // pred_check
      _
    $region27: #{tpu_custom_call.1} parent=1 // pred_check_branch
      %164 = sbr.rel (0) target = $region29
    $region28: #{tpu_custom_call.1} parent=1 // pred_region
      %165 = dma.done [#allocation4], 128
    $region29: #{tpu_custom_call.1} parent=1 // pred_fallthru
      _
    %166 = vsyncpa [#allocation3], 1
    %167 = vsyncpa [#allocation6], 1
    %168 = vsyncpa [#allocation4], 1

</llo_original>
